<compile_context>
chip_gen: v7x
topology: tpu7x:2x2x1
jax: 0.10.0
libtpu: 0.0.40
codegen_flags: <defaults>
</compile_context>

<pallas_src>
import functools

import jax
import jax.numpy as jnp
from jax.experimental import pallas as pl
from jax.experimental.pallas import tpu as pltpu


# ----------------------------------------------------------------------------
# helpers
# ----------------------------------------------------------------------------
def _pick_tile(dim, target, align):
    """Largest `align`-multiple divisor of `dim` that is <= target (or dim)."""
    if dim <= target:
        return dim
    t = (target // align) * align
    while t >= align:
        if dim % t == 0:
            return t
        t -= align
    return dim


@functools.lru_cache(maxsize=None)
def _vmem_limit_bytes():
    """~3/4 of physical VMEM: ~96 MiB on v5e/v6e (128 MiB), ~48 MiB on v7x."""
    try:
        cap = int(pltpu.get_tpu_info().vmem_capacity_bytes)
        return min(cap * 3 // 4, 100 * 1024 * 1024)
    except Exception:
        return 48 * 1024 * 1024   # safe on every supported generation


def _compiler_params(sem):
    return pltpu.CompilerParams(dimension_semantics=sem,
                                vmem_limit_bytes=_vmem_limit_bytes())


def _gelu(y):
    # TODO(synk): HF "gelu" is the exact erf-GELU; tanh approximation used here
    # for guaranteed TPU lowering (numerically ~1e-3 close).
    c = 0.7978845608028654  # sqrt(2/pi)
    return 0.5 * y * (1.0 + jnp.tanh(c * (y + 0.044715 * y * y * y)))


def _layernorm_f32(y, gamma, beta, eps):
    mu = jnp.mean(y, axis=-1, keepdims=True)
    yc = y - mu
    var = jnp.mean(yc * yc, axis=-1, keepdims=True)
    inv = jax.lax.rsqrt(var + eps)
    return yc * inv * gamma + beta


def _pick_heads_per_block(num_heads, seq, head_dim, batch,
                          budget_bytes=4 * 1024 * 1024):
    """Heads per attention grid step.

    hpb must (a) divide num_heads, (b) give a 128-multiple (or full-width)
    column slab so the packed-QKV column read is BlockSpec-expressible,
    (c) keep the f32 score transients within `budget_bytes`, and (d) leave
    >= 2 head-groups when batch == 1 so both v7x TensorCores get work.
    """
    def expressible(h):
        return (h * head_dim) % 128 == 0 or h == num_heads

    cands = [h for h in range(num_heads, 0, -1)
             if num_heads % h == 0 and expressible(h)]
    fits = [h for h in cands if 3 * h * seq * seq * 4 <= budget_bytes]
    pool = fits if fits else [min(cands)]
    if batch == 1:
        split = [h for h in pool if num_heads // h >= 2]
        if split:
            return max(split)
    return max(pool)


# ----------------------------------------------------------------------------
# Kernel A: tiled linear (+ optional activation), bf16 MXU / f32 accumulate
# ----------------------------------------------------------------------------
def _linear_kernel(x_ref, w_ref, b_ref, o_ref, acc_ref, *, activation):
    k = pl.program_id(2)

    @pl.when(k == 0)
    def _():
        acc_ref[...] = jnp.zeros_like(acc_ref)

    acc_ref[...] += jnp.dot(x_ref[...], w_ref[...],
                            preferred_element_type=jnp.float32)

    @pl.when(k == pl.num_programs(2) - 1)
    def _():
        y = acc_ref[...] + b_ref[...]
        if activation == "gelu":
            y = _gelu(y)
        elif activation == "tanh":
            y = jnp.tanh(y)
        o_ref[...] = y.astype(o_ref.dtype)


def linear(x, w, b, activation=None, out_dtype=jnp.bfloat16,
           tm=512, tn=512, tk=1024):
    M, K = x.shape
    N = w.shape[1]
    tm = _pick_tile(M, tm, 16)
    tn = _pick_tile(N, tn, 128)
    tk = _pick_tile(K, tk, 128)
    grid = (M // tm, N // tn, K // tk)
    return pl.pallas_call(
        functools.partial(_linear_kernel, activation=activation),
        out_shape=jax.ShapeDtypeStruct((M, N), out_dtype),
        grid=grid,
        in_specs=[
            pl.BlockSpec((tm, tk), lambda i, j, k: (i, k)),
            pl.BlockSpec((tk, tn), lambda i, j, k: (k, j)),
            pl.BlockSpec((1, tn), lambda i, j, k: (0, j)),
        ],
        out_specs=pl.BlockSpec((tm, tn), lambda i, j, k: (i, j)),
        scratch_shapes=[pltpu.VMEM((tm, tn), jnp.float32)],
        compiler_params=_compiler_params(("parallel", "parallel", "arbitrary")),
    )(x.astype(jnp.bfloat16), w.astype(jnp.bfloat16),
      b.reshape(1, N).astype(jnp.float32))


# ----------------------------------------------------------------------------
# Kernel B: linear + bias + residual-add + LayerNorm epilogue
# (attention output projection).  Full-K single reduction step: the [H,H]
# weight block index is constant -> DMA'd once and VMEM-resident.
# ----------------------------------------------------------------------------
def _linear_res_ln_kernel(x_ref, w_ref, b_ref, r_ref, g_ref, bb_ref,
                          o_ref, *, eps):
    y = jnp.dot(x_ref[...], w_ref[...], preferred_element_type=jnp.float32)
    y = y + b_ref[...] + r_ref[...].astype(jnp.float32)
    o_ref[...] = _layernorm_f32(y, g_ref[...], bb_ref[...], eps).astype(o_ref.dtype)


def linear_residual_layernorm(x, w, b, residual, gamma, beta, eps,
                              out_dtype=jnp.bfloat16, tm=512):
    M, K = x.shape
    H = w.shape[1]
    tm = _pick_tile(M, tm, 16)
    grid = (M // tm,)
    return pl.pallas_call(
        functools.partial(_linear_res_ln_kernel, eps=eps),
        out_shape=jax.ShapeDtypeStruct((M, H), out_dtype),
        grid=grid,
        in_specs=[
            pl.BlockSpec((tm, K), lambda i: (i, 0)),
            pl.BlockSpec((K, H), lambda i: (0, 0)),   # constant -> resident
            pl.BlockSpec((1, H), lambda i: (0, 0)),
            pl.BlockSpec((tm, H), lambda i: (i, 0)),
            pl.BlockSpec((1, H), lambda i: (0, 0)),
            pl.BlockSpec((1, H), lambda i: (0, 0)),
        ],
        out_specs=pl.BlockSpec((tm, H), lambda i: (i, 0)),
        compiler_params=_compiler_params(("parallel",)),
    )(x.astype(jnp.bfloat16), w.astype(jnp.bfloat16),
      b.reshape(1, H).astype(jnp.float32), residual.astype(jnp.bfloat16),
      gamma.reshape(1, H).astype(jnp.float32),
      beta.reshape(1, H).astype(jnp.float32))


# ----------------------------------------------------------------------------
# Kernel C: fused FFN  (x @ wi + bi -> GELU -> @ wo2 + bo2) + residual + LN
# The [tm, ti] GELU intermediate never leaves VMEM.
# ----------------------------------------------------------------------------
def _ffn_res_ln_kernel(x_ref, wi_ref, bi_ref, wo_ref, bo_ref, g_ref, bb_ref,
                       o_ref, acc_ref, *, eps):
    j = pl.program_id(1)

    @pl.when(j == 0)
    def _():
        acc_ref[...] = jnp.zeros_like(acc_ref)

    h = jnp.dot(x_ref[...], wi_ref[...],
                preferred_element_type=jnp.float32) + bi_ref[...]
    h = _gelu(h)
    acc_ref[...] += jnp.dot(h.astype(wo_ref.dtype), wo_ref[...],
                            preferred_element_type=jnp.float32)

    @pl.when(j == pl.num_programs(1) - 1)
    def _():
        y = acc_ref[...] + bo_ref[...] + x_ref[...].astype(jnp.float32)
        o_ref[...] = _layernorm_f32(y, g_ref[...], bb_ref[...],
                                    eps).astype(o_ref.dtype)


def ffn_residual_layernorm(x, wi, bi, wo2, bo2, gamma, beta, eps,
                           out_dtype=jnp.bfloat16, tm=512, ti=512):
    M, H = x.shape
    I = wi.shape[1]
    tm = _pick_tile(M, tm, 16)
    ti = _pick_tile(I, ti, 128)
    grid = (M // tm, I // ti)
    return pl.pallas_call(
        functools.partial(_ffn_res_ln_kernel, eps=eps),
        out_shape=jax.ShapeDtypeStruct((M, H), out_dtype),
        grid=grid,
        in_specs=[
            pl.BlockSpec((tm, H), lambda i, j: (i, 0)),   # x (also the residual)
            pl.BlockSpec((H, ti), lambda i, j: (0, j)),   # wi
            pl.BlockSpec((1, ti), lambda i, j: (0, j)),   # bi
            pl.BlockSpec((ti, H), lambda i, j: (j, 0)),   # wo2
            pl.BlockSpec((1, H), lambda i, j: (0, 0)),    # bo2
            pl.BlockSpec((1, H), lambda i, j: (0, 0)),    # gamma
            pl.BlockSpec((1, H), lambda i, j: (0, 0)),    # beta
        ],
        out_specs=pl.BlockSpec((tm, H), lambda i, j: (i, 0)),
        scratch_shapes=[pltpu.VMEM((tm, H), jnp.float32)],
        compiler_params=_compiler_params(("parallel", "arbitrary")),
    )(x.astype(jnp.bfloat16), wi.astype(jnp.bfloat16),
      bi.reshape(1, I).astype(jnp.float32), wo2.astype(jnp.bfloat16),
      bo2.reshape(1, H).astype(jnp.float32),
      gamma.reshape(1, H).astype(jnp.float32),
      beta.reshape(1, H).astype(jnp.float32))


# ----------------------------------------------------------------------------
# Kernel D: fused embedding-add + LayerNorm (word + pos + type never hit HBM
# as a summed f32 tensor)
# ----------------------------------------------------------------------------
def _embed_ln_kernel(w_ref, p_ref, t_ref, g_ref, b_ref, o_ref, *, eps):
    y = (w_ref[...].astype(jnp.float32) + p_ref[...].astype(jnp.float32)
         + t_ref[...].astype(jnp.float32))
    o_ref[...] = _layernorm_f32(y, g_ref[...], b_ref[...], eps).astype(o_ref.dtype)


def embed_layernorm(w_e, p_e, t_e, gamma, beta, eps,
                    out_dtype=jnp.bfloat16, tm=512):
    M, H = w_e.shape
    tm = _pick_tile(M, tm, 8)
    return pl.pallas_call(
        functools.partial(_embed_ln_kernel, eps=eps),
        out_shape=jax.ShapeDtypeStruct((M, H), out_dtype),
        grid=(M // tm,),
        in_specs=[
            pl.BlockSpec((tm, H), lambda i: (i, 0)),
            pl.BlockSpec((tm, H), lambda i: (i, 0)),
            pl.BlockSpec((tm, H), lambda i: (i, 0)),
            pl.BlockSpec((1, H), lambda i: (0, 0)),
            pl.BlockSpec((1, H), lambda i: (0, 0)),
        ],
        out_specs=pl.BlockSpec((tm, H), lambda i: (i, 0)),
        compiler_params=_compiler_params(("parallel",)),
    )(w_e, p_e, t_e, gamma.reshape(1, H).astype(jnp.float32),
      beta.reshape(1, H).astype(jnp.float32))


# ----------------------------------------------------------------------------
# Kernel E: multi-head attention reading Q/K/V column slabs from packed QKV;
# output written lane-dense as (B, S, hpb*Dh) blocks of a (B, S, H) tensor.
# Q is pre-scaled (1/sqrt(Dh) folded into w_qkv), so no score multiply here.
# ----------------------------------------------------------------------------
def _attn_kernel(q_ref, k_ref, v_ref, m_ref, o_ref, *, hpb, dh):
    bias = m_ref[0]                         # (1, S) additive mask, f32
    for h in range(hpb):                    # static unroll over heads in block
        sl = pl.ds(h * dh, dh)
        q = q_ref[0, :, sl]                 # (S, dh) bf16, pre-scaled
        k = k_ref[0, :, sl]                 # (S, dh) bf16
        v = v_ref[0, :, sl]                 # (S, dh) bf16
        s = jax.lax.dot_general(q, k, (((1,), (1,)), ((), ())),
                                preferred_element_type=jnp.float32) + bias
        m = jnp.max(s, axis=-1, keepdims=True)
        p = jnp.exp(s - m)
        denom = jnp.sum(p, axis=-1, keepdims=True)
        p = p * pl.reciprocal(denom, approx=True)   # EUP slot, off the VALU
        ctx = jnp.dot(p.astype(v.dtype), v, preferred_element_type=jnp.float32)
        o_ref[0, :, sl] = ctx.astype(o_ref.dtype)


def mha_attention(qkv, mask_bias, B, S, nH, Dh):
    """qkv: [B*S, 3H] bf16 (Q pre-scaled); mask_bias: [B, 1, S] additive f32.

    Returns the merged-head context as [B, S, H] bf16 (lane-dense stores).
    """
    H = nH * Dh
    hpb = _pick_heads_per_block(nH, S, Dh, B)
    n_groups = nH // hpb
    W = hpb * Dh
    grid = (B, n_groups)
    out_spec = pl.BlockSpec((1, S, W), lambda b, g: (b, 0, g))
    mask_spec = pl.BlockSpec((1, 1, S), lambda b, g: (b, 0, 0))

    if W % 128 == 0:
        # Read head-group column slabs directly from the packed (B, S, 3H)
        # tensor: Q at block g, K at block g + n_groups, V at g + 2*n_groups.
        x = qkv.reshape(B, S, 3 * H)
        qspec = pl.BlockSpec((1, S, W), lambda b, g: (b, 0, g))
        kspec = pl.BlockSpec((1, S, W), lambda b, g: (b, 0, g + n_groups))
        vspec = pl.BlockSpec((1, S, W), lambda b, g: (b, 0, g + 2 * n_groups))
        args = (x, x, x, mask_bias)
    else:
        # Tiny-model fallback (W not 128-expressible, so hpb == nH): plain
        # column slices in XLA -- still no transposes anywhere.
        q = qkv[:, :H].reshape(B, S, H)
        k = qkv[:, H:2 * H].reshape(B, S, H)
        v = qkv[:, 2 * H:].reshape(B, S, H)
        qspec = pl.BlockSpec((1, S, W), lambda b, g: (b, 0, g))
        kspec = pl.BlockSpec((1, S, W), lambda b, g: (b, 0, g))
        vspec = pl.BlockSpec((1, S, W), lambda b, g: (b, 0, g))
        args = (q, k, v, mask_bias)

    # TODO(synk): for very long sequences a KV-tiled flash variant (extra
    # 'arbitrary' grid axis + m/l/acc scratch) would cap VMEM independent of S.
    return pl.pallas_call(
        functools.partial(_attn_kernel, hpb=hpb, dh=Dh),
        out_shape=jax.ShapeDtypeStruct((B, S, H), jnp.bfloat16),
        grid=grid,
        in_specs=[qspec, kspec, vspec, mask_spec],
        out_specs=out_spec,
        compiler_params=_compiler_params(("parallel", "parallel")),
    )(*args)


# ----------------------------------------------------------------------------
# Parameter init (deterministic, synthetic weights; QKV packed [H, 3H],
# weights pre-cast to bf16, 1/sqrt(Dh) folded into the Q columns)
# ----------------------------------------------------------------------------
def init_params(key, cfg):
    H, I = cfg["hidden_size"], cfg["intermediate_size"]
    V, P, T = cfg["vocab_size"], cfg["max_position_embeddings"], cfg["type_vocab_size"]
    L, pad = cfg["num_hidden_layers"], cfg["pad_token_id"]
    nH = cfg["num_attention_heads"]
    scale = (H // nH) ** -0.5

    def nrm(k, shape):
        return jax.random.normal(k, shape, jnp.float32) * 0.02

    keys = jax.random.split(key, 4 + L)
    params = {
        "word_emb": nrm(keys[0], (V, H)).at[pad].set(0.0),   # padding_idx row = 0
        "pos_emb": nrm(keys[1], (P, H)).at[pad].set(0.0),
        "type_emb": nrm(keys[2], (T, H)),
        "emb_ln_g": jnp.ones((H,), jnp.float32),
        "emb_ln_b": jnp.zeros((H,), jnp.float32),
        "layers": [],
    }
    for li in range(L):
        lk = jax.random.split(keys[3 + li], 6)
        wq, wk, wv = nrm(lk[0], (H, H)), nrm(lk[1], (H, H)), nrm(lk[2], (H, H))
        bq = jnp.zeros((H,), jnp.float32)
        # fold attention scale into the Q projection (mathematically identical)
        w_qkv = jnp.concatenate([wq * scale, wk, wv], axis=1)
        b_qkv = jnp.concatenate([bq * scale, jnp.zeros((2 * H,), jnp.float32)])
        params["layers"].append({
            "w_qkv": w_qkv.astype(jnp.bfloat16),                 # (H, 3H) bf16
            "b_qkv": b_qkv,
            "wo": nrm(lk[3], (H, H)).astype(jnp.bfloat16),
            "bo": jnp.zeros((H,), jnp.float32),
            "ln1_g": jnp.ones((H,), jnp.float32), "ln1_b": jnp.zeros((H,), jnp.float32),
            "wi": nrm(lk[4], (H, I)).astype(jnp.bfloat16),
            "bi": jnp.zeros((I,), jnp.float32),
            "wo2": nrm(lk[5], (I, H)).astype(jnp.bfloat16),
            "bo2": jnp.zeros((H,), jnp.float32),
            "ln2_g": jnp.ones((H,), jnp.float32), "ln2_b": jnp.zeros((H,), jnp.float32),
        })
    pk = jax.random.split(keys[3 + L], 2)
    params["pool_w"] = nrm(pk[0], (H, H)).astype(jnp.bfloat16)
    params["pool_b"] = jnp.zeros((H,), jnp.float32)
    return params


# ----------------------------------------------------------------------------
# Forward pass (wrapper simply delegates to the text model, like the nn.Module)
# ----------------------------------------------------------------------------
def bridgetower_text_forward(params, input_ids, attention_mask, cfg):
    B, S = input_ids.shape
    H = cfg["hidden_size"]
    nH = cfg["num_attention_heads"]
    Dh = H // nH
    pad = cfg["pad_token_id"]
    eps = cfg["layer_norm_eps"]
    M = B * S

    # ---- embeddings (gathers + RoBERTa position ids = plain-JAX glue) ----
    tok_mask = (input_ids != pad).astype(jnp.int32)
    position_ids = jnp.cumsum(tok_mask, axis=1) * tok_mask + pad   # RoBERTa-style
    token_type_ids = jnp.zeros_like(input_ids)
    word_e = params["word_emb"][input_ids].reshape(M, H)
    pos_e = params["pos_emb"][position_ids].reshape(M, H)
    type_e = params["type_emb"][token_type_ids].reshape(M, H)
    x = embed_layernorm(word_e, pos_e, type_e,
                        params["emb_ln_g"], params["emb_ln_b"], eps)   # bf16 [M,H]

    # HF-style additive extended attention mask (keys axis)
    mask_bias = ((1.0 - attention_mask.astype(jnp.float32)) * -1e9
                 ).reshape(B, 1, S)

    n_layers = len(params["layers"])
    for li, layer in enumerate(params["layers"]):
        # fused QKV projection: x read once, lane-dense [M, 3H] output
        qkv = linear(x, layer["w_qkv"], layer["b_qkv"])                # bf16 [M,3H]

        # attention: Q/K/V column slabs read straight from the packed tensor,
        # merged-head output written lane-dense as (B, S, H) -> no transposes
        ctx = mha_attention(qkv, mask_bias, B, S, nH, Dh)              # bf16 [B,S,H]
        ctx = ctx.reshape(M, H)

        # attention output projection fused with residual-add + LayerNorm
        x = linear_residual_layernorm(ctx, layer["wo"], layer["bo"], x,
                                      layer["ln1_g"], layer["ln1_b"], eps)

        # fused FFN (GELU intermediate stays in VMEM) + residual + LayerNorm
        out_dtype = jnp.float32 if li == n_layers - 1 else jnp.bfloat16
        x = ffn_residual_layernorm(x, layer["wi"], layer["bi"],
                                   layer["wo2"], layer["bo2"],
                                   layer["ln2_g"], layer["ln2_b"], eps,
                                   out_dtype=out_dtype)

    last_hidden_state = x.reshape(B, S, H)                              # f32
    pooled_output = linear(last_hidden_state[:, 0, :], params["pool_w"],
                           params["pool_b"], activation="tanh",
                           out_dtype=jnp.float32)
    return last_hidden_state, pooled_output


# ----------------------------------------------------------------------------
if __name__ == "__main__":
    cfg = dict(
        vocab_size=100,
        hidden_size=32,
        num_hidden_layers=2,
        num_attention_heads=4,
        intermediate_size=64,
        max_position_embeddings=40,
        type_vocab_size=1,
        layer_norm_eps=1e-5,
        pad_token_id=1,
    )
    key = jax.random.PRNGKey(0)
    pkey, dkey = jax.random.split(key)
    params = init_params(pkey, cfg)

    B, S = 2, 8
    input_ids = jax.random.randint(dkey, (B, S), 2, cfg["vocab_size"], dtype=jnp.int32)
    input_ids = input_ids.at[1, 6:].set(cfg["pad_token_id"])            # some padding
    attention_mask = (input_ids != cfg["pad_token_id"]).astype(jnp.int32)

    last_hidden_state, pooled_output = bridgetower_text_forward(
        params, input_ids, attention_mask, cfg)
    jax.block_until_ready((last_hidden_state, pooled_output))

    assert last_hidden_state.shape == (B, S, cfg["hidden_size"])
    assert pooled_output.shape == (B, cfg["hidden_size"])
    assert last_hidden_state.dtype == jnp.float32
    assert bool(jnp.all(jnp.isfinite(last_hidden_state)))
    assert bool(jnp.all(jnp.isfinite(pooled_output)))
    print("KERNEL_OK")
</pallas_src>

<mosaic_0001>
module attributes {stable_mosaic.version = 11 : i64} {
  func.func @_embed_ln_kernel(%arg0: i32, %arg1: memref<16x32xf32, #tpu.memory_space<vmem>>, %arg2: memref<16x32xf32, #tpu.memory_space<vmem>>, %arg3: memref<16x32xf32, #tpu.memory_space<vmem>>, %arg4: memref<1x32xf32, #tpu.memory_space<vmem>>, %arg5: memref<1x32xf32, #tpu.memory_space<vmem>>, %arg6: memref<16x32xbf16, #tpu.memory_space<vmem>>) attributes {dimension_semantics = [#tpu.dimension_semantics<parallel>], iteration_bounds = array<i64: 1>, scalar_prefetch = 0 : i64, scratch_operands = 0 : i64, tpu.core_type = #tpu.core_type<tc>, window_params = [{transform_indices = @transform_0, window_bounds = array<i64: 16, 32>}, {transform_indices = @transform_1, window_bounds = array<i64: 16, 32>}, {transform_indices = @transform_2, window_bounds = array<i64: 16, 32>}, {pipeline_mode = #tpu.pipeline_mode<synchronous>, transform_indices = @transform_3, window_bounds = array<i64: 1, 32>}, {pipeline_mode = #tpu.pipeline_mode<synchronous>, transform_indices = @transform_4, window_bounds = array<i64: 1, 32>}, {transform_indices = @transform_5, window_bounds = array<i64: 16, 32>}]} {
    %c0 = arith.constant 0 : index
    %c0_0 = arith.constant 0 : index
    %0 = vector.load %arg1[%c0, %c0_0] : memref<16x32xf32, #tpu.memory_space<vmem>>, vector<16x32xf32>
    %c0_1 = arith.constant 0 : index
    %c0_2 = arith.constant 0 : index
    %1 = vector.load %arg2[%c0_1, %c0_2] : memref<16x32xf32, #tpu.memory_space<vmem>>, vector<16x32xf32>
    %2 = arith.addf %0, %1 : vector<16x32xf32>
    %c0_3 = arith.constant 0 : index
    %c0_4 = arith.constant 0 : index
    %3 = vector.load %arg3[%c0_3, %c0_4] : memref<16x32xf32, #tpu.memory_space<vmem>>, vector<16x32xf32>
    %4 = arith.addf %2, %3 : vector<16x32xf32>
    %c0_5 = arith.constant 0 : index
    %c0_6 = arith.constant 0 : index
    %5 = vector.load %arg4[%c0_5, %c0_6] : memref<1x32xf32, #tpu.memory_space<vmem>>, vector<1x32xf32>
    %c0_7 = arith.constant 0 : index
    %c0_8 = arith.constant 0 : index
    %6 = vector.load %arg5[%c0_7, %c0_8] : memref<1x32xf32, #tpu.memory_space<vmem>>, vector<1x32xf32>
    %cst = arith.constant dense<0.000000e+00> : vector<16xf32>
    %7 = vector.multi_reduction <add>, %4, %cst [1] : vector<16x32xf32> to vector<16xf32>
    %8 = vector.shape_cast %7 : vector<16xf32> to vector<16x1xf32>
    %cst_9 = arith.constant 3.200000e+01 : f32
    %9 = vector.broadcast %cst_9 : f32 to vector<16x1xf32>
    %10 = arith.divf %8, %9 : vector<16x1xf32>
    %11 = vector.broadcast %10 : vector<16x1xf32> to vector<16x32xf32>
    %12 = arith.subf %4, %11 : vector<16x32xf32>
    %13 = arith.mulf %12, %12 : vector<16x32xf32>
    %cst_10 = arith.constant dense<0.000000e+00> : vector<16xf32>
    %14 = vector.multi_reduction <add>, %13, %cst_10 [1] : vector<16x32xf32> to vector<16xf32>
    %15 = vector.shape_cast %14 : vector<16xf32> to vector<16x1xf32>
    %cst_11 = arith.constant 3.200000e+01 : f32
    %16 = vector.broadcast %cst_11 : f32 to vector<16x1xf32>
    %17 = arith.divf %15, %16 : vector<16x1xf32>
    %cst_12 = arith.constant 9.99999974E-6 : f32
    %18 = vector.broadcast %cst_12 : f32 to vector<16x1xf32>
    %19 = arith.addf %17, %18 : vector<16x1xf32>
    %20 = math.rsqrt %19 : vector<16x1xf32>
    %21 = vector.broadcast %20 : vector<16x1xf32> to vector<16x32xf32>
    %22 = arith.mulf %12, %21 : vector<16x32xf32>
    %23 = vector.broadcast %5 : vector<1x32xf32> to vector<16x32xf32>
    %24 = arith.mulf %22, %23 : vector<16x32xf32>
    %25 = vector.broadcast %6 : vector<1x32xf32> to vector<16x32xf32>
    %26 = arith.addf %24, %25 : vector<16x32xf32>
    %27 = arith.truncf %26 : vector<16x32xf32> to vector<16x32xbf16>
    %c0_13 = arith.constant 0 : index
    %c0_14 = arith.constant 0 : index
    %28 = vector.load %arg6[%c0_13, %c0_14] : memref<16x32xbf16, #tpu.memory_space<vmem>>, vector<16x32xbf16>
    tpu.vector_store %arg6[%c0_13, %c0_14], %27 {strides = array<i32>} : memref<16x32xbf16, #tpu.memory_space<vmem>>, vector<16x32xbf16>,
    return
  }
  func.func @transform_0(%arg0: i32) -> (i32, i32) {
    %c0_i32 = arith.constant 0 : i32
    %c0_i32_0 = arith.constant 0 : i32
    return %arg0, %c0_i32 : i32, i32
  }
  func.func @transform_1(%arg0: i32) -> (i32, i32) {
    %c0_i32 = arith.constant 0 : i32
    %c0_i32_0 = arith.constant 0 : i32
    return %arg0, %c0_i32 : i32, i32
  }
  func.func @transform_2(%arg0: i32) -> (i32, i32) {
    %c0_i32 = arith.constant 0 : i32
    %c0_i32_0 = arith.constant 0 : i32
    return %arg0, %c0_i32 : i32, i32
  }
  func.func @transform_3(%arg0: i32) -> (i32, i32) {
    %c0_i32 = arith.constant 0 : i32
    %c0_i32_0 = arith.constant 0 : i32
    %c0_i32_1 = arith.constant 0 : i32
    return %c0_i32, %c0_i32_0 : i32, i32
  }
  func.func @transform_4(%arg0: i32) -> (i32, i32) {
    %c0_i32 = arith.constant 0 : i32
    %c0_i32_0 = arith.constant 0 : i32
    %c0_i32_1 = arith.constant 0 : i32
    return %c0_i32, %c0_i32_0 : i32, i32
  }
  func.func @transform_5(%arg0: i32) -> (i32, i32) {
    %c0_i32 = arith.constant 0 : i32
    %c0_i32_0 = arith.constant 0 : i32
    return %arg0, %c0_i32 : i32, i32
  }
}

</mosaic_0001>

<llo_original>
// kernel: tpu_custom_call.1
$region0: #{tpu_custom_call.1}
  #allocation0 [shape = 'u32[]', space=smem, size = 0x4, offset = 0x4, fixed_abs, tag = 'smem constant byte address 0x4 - core index']
  #allocation1 [shape = 'u32[144,128]{1,0:T(1,128)}', space=vmem, size = 0x12000, scoped, tag = 'internal scratch']
  %s0 = inlined_call_operand.hbm [shape: f32[16,32], index: 0, kind: input, shape index: {}]
  %s1 = inlined_call_operand.hbm [shape: f32[16,32], index: 1, kind: input, shape index: {}]
  %s2 = inlined_call_operand.hbm [shape: f32[16,32], index: 2, kind: input, shape index: {}]
  %s3 = inlined_call_operand.vmem [shape: f32[1,32], index: 3, kind: input, shape index: {}]
  %s4 = inlined_call_operand.vmem [shape: f32[1,32], index: 4, kind: input, shape index: {}]
  %s5 = inlined_call_operand.hbm [shape: bf16[16,32], index: 5, kind: output, shape index: {}]
  %s6 = sld [smem:[#allocation0]]
  $region42: #{tpu_custom_call.1} parent=0
    _
  %s8 = ssub.s32 1, %s6
  %s9 = scalar_select 0, %s8, %s6
  $region1: #{tpu_custom_call.1} parent=0
    #allocation2 [shape = 'u8[8192]{0}', space=vmem, size = 0x2000, scoped, tag = 'input window, operand 0, single buffered']
    #allocation3 [shape = 's32[1]{0}', space=sflag, size = 0x4, scoped, tag = 'scoped memory for tpu_custom_call.1']
    #allocation4 [shape = 's32[1]{0}', space=sflag, size = 0x4, scoped, tag = 'scoped memory for tpu_custom_call.1']
    #allocation5 [shape = 'u8[8192]{0}', space=vmem, size = 0x2000, scoped, tag = 'input window, operand 1, single buffered']
    #allocation6 [shape = 's32[1]{0}', space=sflag, size = 0x4, scoped, tag = 'scoped memory for tpu_custom_call.1']
    #allocation7 [shape = 'u8[8192]{0}', space=vmem, size = 0x2000, scoped, tag = 'input window, operand 2, single buffered']
    #allocation8 [shape = 'u8[4096]{0}', space=vmem, size = 0x1000, scoped, tag = 'output window, operand 0, single buffered']
    %10 = vsyncpa [#allocation3], 0
    %11 = vsyncpa [#allocation6], 0
    %12 = vsyncpa [#allocation4], 0
    // Predicated region
    $region2: #{tpu_custom_call.1} parent=1 // pred_check
      _
    $region3: #{tpu_custom_call.1} parent=1 // pred_check_branch
      %14 = sbr.rel (0) target = $region5
    $region4: #{tpu_custom_call.1} parent=1 // pred_region
      %s16 = ssub.s32 256, 256
      %17 = vsyncadd [#allocation3], %s16
      %s18 = sshll.u32 [#allocation2], 4
      %s19 = int_to_ptr.vmem [resolvable:$true] %s18
      %24 = dma.hbm_to_vmem [thread:$0]  %s0, 256, %s19, [#allocation3], 128, 128, 8
    $region5: #{tpu_custom_call.1} parent=1 // pred_fallthru
      _
    // Predicated region
    $region6: #{tpu_custom_call.1} parent=1 // pred_check
      _
    $region7: #{tpu_custom_call.1} parent=1 // pred_check_branch
      %26 = sbr.rel (0) target = $region9
    $region8: #{tpu_custom_call.1} parent=1 // pred_region
      %s28 = ssub.s32 256, 256
      %29 = vsyncadd [#allocation6], %s28
      %s30 = sshll.u32 [#allocation5], 4
      %s31 = int_to_ptr.vmem [resolvable:$true] %s30
      %36 = dma.hbm_to_vmem [thread:$0]  %s1, 256, %s31, [#allocation6], 128, 128, 8
    $region9: #{tpu_custom_call.1} parent=1 // pred_fallthru
      _
    // Predicated region
    $region10: #{tpu_custom_call.1} parent=1 // pred_check
      _
    $region11: #{tpu_custom_call.1} parent=1 // pred_check_branch
      %38 = sbr.rel (0) target = $region13
    $region12: #{tpu_custom_call.1} parent=1 // pred_region
      %s40 = ssub.s32 256, 256
      %41 = vsyncadd [#allocation6], %s40
      %s42 = sshll.u32 [#allocation7], 4
      %s43 = int_to_ptr.vmem [resolvable:$true] %s42
      %48 = dma.hbm_to_vmem [thread:$0]  %s2, 256, %s43, [#allocation6], 128, 128, 8
    $region13: #{tpu_custom_call.1} parent=1 // pred_fallthru
      _
    // Predicated region
    $region14: #{tpu_custom_call.1} parent=1 // pred_check
      _
    $region15: #{tpu_custom_call.1} parent=1 // pred_check_branch
      %50 = sbr.rel (0) target = $region17
    $region16: #{tpu_custom_call.1} parent=1 // pred_region
      _
    $region17: #{tpu_custom_call.1} parent=1 // pred_fallthru
      _
    // Predicated region
    $region18: #{tpu_custom_call.1} parent=1 // pred_check
      _
    $region19: #{tpu_custom_call.1} parent=1 // pred_check_branch
      %52 = sbr.rel (0) target = $region21
    $region20: #{tpu_custom_call.1} parent=1 // pred_region
      _
    $region21: #{tpu_custom_call.1} parent=1 // pred_fallthru
      _
    // Predicated region
    $region22: #{tpu_custom_call.1} parent=1 // pred_check
      _
    $region23: #{tpu_custom_call.1} parent=1 // pred_check_branch
      %54 = sbr.rel (0) target = $region25
    $region24: #{tpu_custom_call.1} parent=1 // pred_region
      %55 = dma.done [#allocation3], 256
    $region25: #{tpu_custom_call.1} parent=1 // pred_fallthru
      _
    // Predicated region
    $region26: #{tpu_custom_call.1} parent=1 // pred_check
      _
    $region27: #{tpu_custom_call.1} parent=1 // pred_check_branch
      %57 = sbr.rel (0) target = $region29
    $region28: #{tpu_custom_call.1} parent=1 // pred_region
      %58 = dma.done [#allocation6], 256
    $region29: #{tpu_custom_call.1} parent=1 // pred_fallthru
      _
    // Predicated region
    $region30: #{tpu_custom_call.1} parent=1 // pred_check
      _
    $region31: #{tpu_custom_call.1} parent=1 // pred_check_branch
      %60 = sbr.rel (0) target = $region33
    $region32: #{tpu_custom_call.1} parent=1 // pred_region
      %61 = dma.done [#allocation6], 256
    $region33: #{tpu_custom_call.1} parent=1 // pred_fallthru
      _
    %v62 = vld [vmem:[#allocation2] sm:$0xff]
    %v63 = vld [vmem:[#allocation2 + $0x8] sm:$0xff]
    %v64 = vld [vmem:[#allocation5] sm:$0xff]
    %v65 = vld [vmem:[#allocation5 + $0x8] sm:$0xff]
    %v66 = vadd.f32 %v62, %v64
    %v67 = vadd.f32 %v63, %v65
    %v68 = vld [vmem:[#allocation7] sm:$0xff]
    %v69 = vld [vmem:[#allocation7 + $0x8] sm:$0xff]
    %v70 = vadd.f32 %v66, %v68
    %v71 = vadd.f32 %v67, %v69
    %v72 = vld [vmem:[%s3] sm:$0x1]
    %v73 = vld [vmem:[%s4] sm:$0x1]
    %vm74 = vcmask 261120
    %v75 = vsel %vm74, %v70, 0.0
    %76 = vadd.xlane.f32.xlu0 %v75
    %v77 = vpop.xlane.xlu0 %76
    %v78 = vsel %vm74, %v71, 0.0
    %79 = vadd.xlane.f32.xlu0 %v78
    %v80 = vpop.xlane.xlu0 %79
    %v81 = vrcp.pop 32.0
    %v82 = vmul.f32 %v77, %v81
    %v83 = vmul.f32 %v80, %v81
    %v84 = vsub.f32 %v70, %v82
    %v85 = vsub.f32 %v71, %v83
    %v86 = vmul.f32 %v84, %v84
    %v87 = vmul.f32 %v85, %v85
    %v88 = vsel %vm74, %v86, 0.0
    %89 = vadd.xlane.f32.xlu0 %v88
    %v90 = vpop.xlane.xlu0 %89
    %v91 = vsel %vm74, %v87, 0.0
    %92 = vadd.xlane.f32.xlu0 %v91
    %v93 = vpop.xlane.xlu0 %92
    %v94 = vmul.f32 %v90, %v81
    %v95 = vmul.f32 %v93, %v81
    %v96 = vadd.f32 %v94, 1e-05
    %v97 = vadd.f32 %v95, 1e-05
    %v98 = vrsqrt.pop %v96
    %v99 = vrsqrt.pop %v97
    %v100 = vmul.f32 %v84, %v98
    %v101 = vmul.f32 %v85, %v99
    %v103 = vlaneseq
    %v104 = vshrl.u32 %v103, 7
    %v105 = vsub.s32 0, %v104
    %v106 = vrot.slane %v72, %v105
    %v108 = vmul.f32 %v100, %v106
    %v109 = vmul.f32 %v101, %v106
    %v111 = vlaneseq
    %v112 = vshrl.u32 %v111, 7
    %v113 = vsub.s32 0, %v112
    %v114 = vrot.slane %v73, %v113
    %v116 = vadd.f32 %v108, %v114
    %v117 = vadd.f32 %v109, %v114
    %v118 = vpack.c.bf16 %v117, %v116
    %v120 = vunpack.c.l.b16 %v118
    %v121 = vunpack.c.h.b16 %v118
    %v122 = vpack.c.b16 %v120, %v120
    %v123 = vpack.c.b16 %v121, %v121
    %vm126 = vcmask 257024
    %127 = vst.msk [vmem:[#allocation8] sm:$0xf] %vm126, %v122
    %128 = vst.msk [vmem:[#allocation8 + $0x4] sm:$0xf] %vm126, %v123
    // Predicated region
    $region34: #{tpu_custom_call.1} parent=1 // pred_check
      _
    $region35: #{tpu_custom_call.1} parent=1 // pred_check_branch
      %130 = sbr.rel (0) target = $region37
    $region36: #{tpu_custom_call.1} parent=1 // pred_region
      %s132 = ssub.s32 128, 128
      %133 = vsyncadd [#allocation4], %s132
      %s134 = sshll.u32 [#allocation8], 4
      %s135 = int_to_ptr.vmem [resolvable:$true] %s134
      %140 = dma.vmem_to_hbm [thread:$0]  %s135, 128, %s5, [#allocation4], 64, 64, 4
    $region37: #{tpu_custom_call.1} parent=1 // pred_fallthru
      _
    // Predicated region
    $region38: #{tpu_custom_call.1} parent=1 // pred_check
      _
    $region39: #{tpu_custom_call.1} parent=1 // pred_check_branch
      %142 = sbr.rel (0) target = $region41
    $region40: #{tpu_custom_call.1} parent=1 // pred_region
      %143 = dma.done [#allocation4], 128
    $region41: #{tpu_custom_call.1} parent=1 // pred_fallthru
      _
    %144 = vsyncpa [#allocation3], 1
    %145 = vsyncpa [#allocation6], 1
    %146 = vsyncpa [#allocation4], 1

</llo_original>
